<compile_context>
chip_gen: v7x
topology: tpu7x:2x2x1
jax: 0.10.0
libtpu: 0.0.40
codegen_flags: <defaults>
</compile_context>

<pallas_src>
import functools

import jax
import jax.numpy as jnp
from jax import lax
from jax.experimental import pallas as pl
from jax.experimental.pallas import tpu as pltpu


def _round_up(a: int, m: int) -> int:
    return (a + m - 1) // m * m


def _pad2(a, rows, cols):
    return jnp.pad(a, ((0, rows - a.shape[0]), (0, cols - a.shape[1])))


def readout_kernel(n2g_ref, x_ref, gx_ref,
                   w1_ref, b1_ref, w2_ref, b2_ref,
                   w3a_ref, w3b_ref, w3c_ref, b3_ref,
                   out_ref, z1_acc, cnt_acc, *, mxu_dtype):
    v = pl.program_id(1)
    last_v = pl.num_programs(1) - 1

    @pl.when(v == 0)
    def _init():
        z1_acc[...] = jnp.zeros_like(z1_acc)
        cnt_acc[...] = jnp.zeros_like(cnt_acc)

    # --- gated node features for this V tile (f32 accumulate, f32 gating) ---
    x = x_ref[...]                                                  # [Vt, F]
    h1 = jnp.dot(x, w1_ref[...],
                 preferred_element_type=jnp.float32) + b1_ref[...]  # [Vt, H]
    h2 = jnp.dot(x, w2_ref[...],
                 preferred_element_type=jnp.float32) + b2_ref[...]  # [Vt, H]
    gated = h1 * jax.nn.sigmoid(h2)                                 # [Vt, H] f32

    # --- segment sum via lane-dense [Nb, Vt] one-hot matmul (MXU native) ---
    nb = z1_acc.shape[0]
    vt = x.shape[0]
    n_off = pl.program_id(0) * nb
    gids = lax.broadcasted_iota(jnp.int32, (nb, vt), 0) + n_off     # [Nb, Vt]
    mask = n2g_ref[...] == gids                                     # [Nb, Vt] bool
    onehot = mask.astype(mxu_dtype)
    z1_acc[...] += jnp.dot(onehot, gated.astype(mxu_dtype),
                           preferred_element_type=jnp.float32)      # [Nb, H]
    # counts: XLU lane reduction (no 1-lane MXU matmul)
    cnt_acc[...] += jnp.sum(mask.astype(jnp.float32), axis=-1, keepdims=True)

    # --- finalize: out = Z1@W3a + (Z1@W3b)/counts + Gx@W3c + b3 ------------
    @pl.when(v == last_v)
    def _finish():
        # clamp counts to >= 1 (matches torch_scatter.scatter_mean for empty
        # graphs; also keeps padded graph rows finite)
        inv_cnt = pl.reciprocal(jnp.maximum(cnt_acc[...], 1.0))     # [Nb, 1]
        z1m = z1_acc[...].astype(mxu_dtype)
        out = jnp.dot(z1m, w3a_ref[...], preferred_element_type=jnp.float32)
        out += jnp.dot(z1m, w3b_ref[...],
                       preferred_element_type=jnp.float32) * inv_cnt
        out += jnp.dot(gx_ref[...], w3c_ref[...],
                       preferred_element_type=jnp.float32)
        out_ref[...] = (out + b3_ref[...]).astype(out_ref.dtype)


def readout_pallas(x, node2graph, global_x, params, *,
                   mxu_dtype=jnp.float32, v_tile=512, n_graph_block=None):
    """Pallas Readout forward. Set mxu_dtype=jnp.bfloat16 on v6e/v7x for speed."""
    w1, b1, w2, b2, w3, b3 = params
    V, F = x.shape
    N, G = global_x.shape
    H = w1.shape[1]
    O = w3.shape[1]
    f32 = jnp.float32

    # ---- lane / sublane padding -------------------------------------------
    F_pad = _round_up(F, 128)
    H_pad = _round_up(H, 128)
    G_pad = _round_up(G, 128)
    O_pad = _round_up(O, 128)
    N_pad = _round_up(N, 8)

    # graph-axis blocking (parallel grid axis; sizes work on 2-TC v7x)
    if n_graph_block is None:
        n_graph_block = N_pad
    Nb = _round_up(min(n_graph_block, N_pad), 8)
    N_pad = _round_up(N_pad, Nb)
    n_blocks = N_pad // Nb

    # node-axis tiling (reduction axis, accumulated in VMEM scratch)
    if V <= v_tile:
        Vt = _round_up(V, 8)
        V_pad = Vt
    else:
        Vt = _round_up(v_tile, 128)
        V_pad = _round_up(V, Vt)
    v_tiles = V_pad // Vt

    # ---- pad / cast operands ----------------------------------------------
    x_p = _pad2(x.astype(f32), V_pad, F_pad).astype(mxu_dtype)
    n2g = jnp.full((1, V_pad), -1, jnp.int32)
    n2g = n2g.at[0, :V].set(node2graph.astype(jnp.int32).reshape(V))
    gx_p = _pad2(global_x.astype(f32), N_pad, G_pad).astype(mxu_dtype)

    w1_p = _pad2(w1.astype(f32), F_pad, H_pad).astype(mxu_dtype)
    w2_p = _pad2(w2.astype(f32), F_pad, H_pad).astype(mxu_dtype)
    b1_p = _pad2(b1.reshape(1, -1).astype(f32), 1, H_pad)
    b2_p = _pad2(b2.reshape(1, -1).astype(f32), 1, H_pad)

    # split W3 so the concat / Z2 temps never materialize
    w3a_p = _pad2(w3[:H].astype(f32), H_pad, O_pad).astype(mxu_dtype)
    w3b_p = _pad2(w3[H:2 * H].astype(f32), H_pad, O_pad).astype(mxu_dtype)
    w3c_p = _pad2(w3[2 * H:].astype(f32), G_pad, O_pad).astype(mxu_dtype)
    b3_p = _pad2(b3.reshape(1, -1).astype(f32), 1, O_pad)

    inputs = (n2g, x_p, gx_p, w1_p, b1_p, w2_p, b2_p,
              w3a_p, w3b_p, w3c_p, b3_p)

    in_specs = [
        pl.BlockSpec((1, Vt), lambda n, v: (0, v)),          # node2graph (lane-dense)
        pl.BlockSpec((Vt, F_pad), lambda n, v: (v, 0)),      # x tile
        pl.BlockSpec((Nb, G_pad), lambda n, v: (n, 0)),      # global_x block
        pl.BlockSpec((F_pad, H_pad), lambda n, v: (0, 0)),   # W1
        pl.BlockSpec((1, H_pad), lambda n, v: (0, 0)),       # b1
        pl.BlockSpec((F_pad, H_pad), lambda n, v: (0, 0)),   # W2
        pl.BlockSpec((1, H_pad), lambda n, v: (0, 0)),       # b2
        pl.BlockSpec((H_pad, O_pad), lambda n, v: (0, 0)),   # W3a
        pl.BlockSpec((H_pad, O_pad), lambda n, v: (0, 0)),   # W3b
        pl.BlockSpec((G_pad, O_pad), lambda n, v: (0, 0)),   # W3c
        pl.BlockSpec((1, O_pad), lambda n, v: (0, 0)),       # b3
    ]
    out_spec = pl.BlockSpec((Nb, O_pad), lambda n, v: (n, 0))

    itemsize = lambda a: a.size * a.dtype.itemsize
    flops = int(n_blocks * (2 * 2 * V_pad * F_pad * H_pad       # linear1 + linear2
                            + 2 * V_pad * Nb * H_pad)           # segment-sum matmul
                + 2 * N_pad * (2 * H_pad + G_pad) * O_pad)      # final linear
    cost = pl.CostEstimate(
        flops=flops,
        transcendentals=int(n_blocks * V_pad * H_pad),
        bytes_accessed=int(sum(itemsize(a) for a in inputs) + N_pad * O_pad * 4),
    )

    kernel = functools.partial(readout_kernel, mxu_dtype=mxu_dtype)
    out_padded = pl.pallas_call(
        kernel,
        out_shape=jax.ShapeDtypeStruct((N_pad, O_pad), jnp.float32),
        grid_spec=pltpu.PrefetchScalarGridSpec(
            num_scalar_prefetch=0,
            grid=(n_blocks, v_tiles),
            in_specs=in_specs,
            out_specs=out_spec,
            scratch_shapes=[
                pltpu.VMEM((Nb, H_pad), jnp.float32),   # Z1 accumulator
                pltpu.VMEM((Nb, 1), jnp.float32),       # per-graph node counts
            ],
        ),
        compiler_params=pltpu.CompilerParams(
            dimension_semantics=("parallel", "arbitrary")),
        cost_estimate=cost,
    )(*inputs)

    # TODO(synk): if node2graph is guaranteed sorted, replace the one-hot matmul
    # with a scalar-prefetched per-graph offset reduction (O(V*H) instead of
    # O(V*N*H)); not done here since sortedness is not part of the module spec.
    return out_padded[:N, :O]


def readout_reference(x, node2graph, global_x, params):
    w1, b1, w2, b2, w3, b3 = params
    gated = (x @ w1 + b1) * jax.nn.sigmoid(x @ w2 + b2)
    n_graph = global_x.shape[0]
    onehot = (node2graph[:, None] == jnp.arange(n_graph)[None, :]).astype(jnp.float32)
    z1 = onehot.T @ gated
    counts = jnp.maximum(onehot.sum(axis=0)[:, None], 1.0)  # torch_scatter clamps >= 1
    z2 = z1 / counts
    z = jnp.concatenate([z1, z2, global_x], axis=-1)
    return z @ w3 + b3


def _init_linear(kw, kb, din, dout):
    scale = 1.0 / jnp.sqrt(jnp.float32(din))
    w = jax.random.uniform(kw, (din, dout), jnp.float32, -scale, scale)
    b = jax.random.uniform(kb, (1, dout), jnp.float32, -scale, scale)
    return w, b


def _make_case(key, V, node_dim, hidden_dim, global_dim, output_dim, n_graph):
    ks = jax.random.split(key, 9)
    x = jax.random.normal(ks[0], (V, node_dim), jnp.float32)
    node2graph = jax.random.randint(ks[8], (V,), 0, n_graph, jnp.int32)
    global_x = jax.random.normal(ks[1], (n_graph, global_dim), jnp.float32)
    w1, b1 = _init_linear(ks[2], ks[3], node_dim, hidden_dim)
    w2, b2 = _init_linear(ks[4], ks[5], node_dim, hidden_dim)
    w3, b3 = _init_linear(ks[6], ks[7], 2 * hidden_dim + global_dim, output_dim)
    return x, node2graph, global_x, (w1, b1, w2, b2, w3, b3)


if __name__ == "__main__":
    key = jax.random.PRNGKey(0)
    k1, k2 = jax.random.split(key)

    # --- case 1: small shapes from the module's forward (single tile) -------
    x, n2g, gx, params = _make_case(k1, V=16, node_dim=32, hidden_dim=32,
                                    global_dim=8, output_dim=16, n_graph=2)
    ref = readout_reference(x, n2g, gx, params)

    out_f32 = jax.block_until_ready(
        readout_pallas(x, n2g, gx, params, mxu_dtype=jnp.float32))
    assert out_f32.shape == ref.shape
    assert jnp.allclose(out_f32, ref, atol=1e-4, rtol=1e-4), "f32 mismatch (case 1)"

    # bf16 MXU-input path (v6e/v7x fast path): f32 accumulation, looser tol.
    out_bf16 = jax.block_until_ready(
        readout_pallas(x, n2g, gx, params, mxu_dtype=jnp.bfloat16))
    assert jnp.allclose(out_bf16, ref, atol=1e-1, rtol=1e-1), "bf16 mismatch (case 1)"

    # --- case 2: multi V-tile + parallel graph-block axis, unpadded dims ----
    x2, n2g2, gx2, params2 = _make_case(k2, V=1200, node_dim=64, hidden_dim=48,
                                        global_dim=24, output_dim=40, n_graph=24)
    ref2 = readout_reference(x2, n2g2, gx2, params2)
    out2 = jax.block_until_ready(
        readout_pallas(x2, n2g2, gx2, params2, mxu_dtype=jnp.float32,
                       v_tile=512, n_graph_block=8))
    assert out2.shape == ref2.shape
    assert jnp.allclose(out2, ref2, atol=1e-3, rtol=1e-4), "f32 mismatch (case 2)"

    # TODO(synk): dropout in linear1 is a no-op in eval mode and is omitted.
    print("KERNEL_OK")
</pallas_src>

<mosaic_0001>
module attributes {stable_mosaic.version = 11 : i64} {
  func.func @readout_kernel(%arg0: i32, %arg1: i32, %arg2: memref<1x16xi32, #tpu.memory_space<vmem>>, %arg3: memref<16x128xf32, #tpu.memory_space<vmem>>, %arg4: memref<8x128xf32, #tpu.memory_space<vmem>>, %arg5: memref<128x128xf32, #tpu.memory_space<vmem>>, %arg6: memref<1x128xf32, #tpu.memory_space<vmem>>, %arg7: memref<128x128xf32, #tpu.memory_space<vmem>>, %arg8: memref<1x128xf32, #tpu.memory_space<vmem>>, %arg9: memref<128x128xf32, #tpu.memory_space<vmem>>, %arg10: memref<128x128xf32, #tpu.memory_space<vmem>>, %arg11: memref<128x128xf32, #tpu.memory_space<vmem>>, %arg12: memref<1x128xf32, #tpu.memory_space<vmem>>, %arg13: memref<8x128xf32, #tpu.memory_space<vmem>>, %arg14: memref<8x128xf32, #tpu.memory_space<vmem>>, %arg15: memref<8x1xf32, #tpu.memory_space<vmem>>) attributes {dimension_semantics = [#tpu.dimension_semantics<parallel>, #tpu.dimension_semantics<arbitrary>], iteration_bounds = array<i64: 1, 1>, scalar_prefetch = 0 : i64, scratch_operands = 2 : i64, tpu.core_type = #tpu.core_type<tc>, window_params = [{transform_indices = @transform_0, window_bounds = array<i64: 1, 16>}, {transform_indices = @transform_1, window_bounds = array<i64: 16, 128>}, {transform_indices = @transform_2, window_bounds = array<i64: 8, 128>}, {pipeline_mode = #tpu.pipeline_mode<synchronous>, transform_indices = @transform_3, window_bounds = array<i64: 128, 128>}, {pipeline_mode = #tpu.pipeline_mode<synchronous>, transform_indices = @transform_4, window_bounds = array<i64: 1, 128>}, {pipeline_mode = #tpu.pipeline_mode<synchronous>, transform_indices = @transform_5, window_bounds = array<i64: 128, 128>}, {pipeline_mode = #tpu.pipeline_mode<synchronous>, transform_indices = @transform_6, window_bounds = array<i64: 1, 128>}, {pipeline_mode = #tpu.pipeline_mode<synchronous>, transform_indices = @transform_7, window_bounds = array<i64: 128, 128>}, {pipeline_mode = #tpu.pipeline_mode<synchronous>, transform_indices = @transform_8, window_bounds = array<i64: 128, 128>}, {pipeline_mode = #tpu.pipeline_mode<synchronous>, transform_indices = @transform_9, window_bounds = array<i64: 128, 128>}, {pipeline_mode = #tpu.pipeline_mode<synchronous>, transform_indices = @transform_10, window_bounds = array<i64: 1, 128>}, {transform_indices = @transform_11, window_bounds = array<i64: 8, 128>}]} {
    %c0_i32 = arith.constant 0 : i32
    %0 = arith.cmpi eq, %arg1, %c0_i32 : i32
    %1 = arith.extui %0 : i1 to i32
    %c0_i32_0 = arith.constant 0 : i32
    %2 = arith.cmpi ne, %1, %c0_i32_0 : i32
    scf.if %2 {
      %cst_26 = arith.constant 0.000000e+00 : f32
      %43 = vector.broadcast %cst_26 : f32 to vector<8x128xf32>
      %c0_27 = arith.constant 0 : index
      %c0_28 = arith.constant 0 : index
      %44 = vector.load %arg14[%c0_27, %c0_28] : memref<8x128xf32, #tpu.memory_space<vmem>>, vector<8x128xf32>
      tpu.vector_store %arg14[%c0_27, %c0_28], %43 {strides = array<i32>} : memref<8x128xf32, #tpu.memory_space<vmem>>, vector<8x128xf32>,
      %cst_29 = arith.constant 0.000000e+00 : f32
      %45 = vector.broadcast %cst_29 : f32 to vector<8x1xf32>
      %c0_30 = arith.constant 0 : index
      %c0_31 = arith.constant 0 : index
      %46 = vector.load %arg15[%c0_30, %c0_31] : memref<8x1xf32, #tpu.memory_space<vmem>>, vector<8x1xf32>
      tpu.vector_store %arg15[%c0_30, %c0_31], %45 {strides = array<i32>} : memref<8x1xf32, #tpu.memory_space<vmem>>, vector<8x1xf32>,
    } else {
    }
    %c0 = arith.constant 0 : index
    %c0_1 = arith.constant 0 : index
    %3 = vector.load %arg3[%c0, %c0_1] : memref<16x128xf32, #tpu.memory_space<vmem>>, vector<16x128xf32>
    %c0_2 = arith.constant 0 : index
    %c0_3 = arith.constant 0 : index
    %4 = vector.load %arg5[%c0_2, %c0_3] : memref<128x128xf32, #tpu.memory_space<vmem>>, vector<128x128xf32>
    %cst = arith.constant dense<0.000000e+00> : vector<16x128xf32>
    %5 = tpu.matmul %3, %4, %cst {dimension_numbers = #tpu.dot_dimension_numbers<[1], [0], [0], [1], [0, 0, 1, 1], [], []>} : vector<16x128xf32>, vector<128x128xf32>, vector<16x128xf32> -> vector<16x128xf32>
    %c0_4 = arith.constant 0 : index
    %c0_5 = arith.constant 0 : index
    %6 = vector.load %arg6[%c0_4, %c0_5] : memref<1x128xf32, #tpu.memory_space<vmem>>, vector<1x128xf32>
    %7 = vector.broadcast %6 : vector<1x128xf32> to vector<16x128xf32>
    %8 = arith.addf %5, %7 : vector<16x128xf32>
    %c0_6 = arith.constant 0 : index
    %c0_7 = arith.constant 0 : index
    %9 = vector.load %arg7[%c0_6, %c0_7] : memref<128x128xf32, #tpu.memory_space<vmem>>, vector<128x128xf32>
    %cst_8 = arith.constant dense<0.000000e+00> : vector<16x128xf32>
    %10 = tpu.matmul %3, %9, %cst_8 {dimension_numbers = #tpu.dot_dimension_numbers<[1], [0], [0], [1], [0, 0, 1, 1], [], []>} : vector<16x128xf32>, vector<128x128xf32>, vector<16x128xf32> -> vector<16x128xf32>
    %c0_9 = arith.constant 0 : index
    %c0_10 = arith.constant 0 : index
    %11 = vector.load %arg8[%c0_9, %c0_10] : memref<1x128xf32, #tpu.memory_space<vmem>>, vector<1x128xf32>
    %12 = vector.broadcast %11 : vector<1x128xf32> to vector<16x128xf32>
    %13 = arith.addf %10, %12 : vector<16x128xf32>
    %14 = arith.negf %13 : vector<16x128xf32>
    %15 = math.exp %14 : vector<16x128xf32>
    %cst_11 = arith.constant 1.000000e+00 : f32
    %16 = vector.broadcast %cst_11 : f32 to vector<16x128xf32>
    %17 = arith.addf %16, %15 : vector<16x128xf32>
    %18 = arith.divf %16, %17 : vector<16x128xf32>
    %19 = arith.mulf %8, %18 : vector<16x128xf32>
    %c8_i32 = arith.constant 8 : i32
    %20 = arith.muli %arg0, %c8_i32 : i32
    %21 = tpu.iota {dimensions = array<i32: 0>} : vector<8x16xi32>
    %22 = vector.broadcast %20 : i32 to vector<8x16xi32>
    %23 = arith.addi %21, %22 : vector<8x16xi32>
    %c0_12 = arith.constant 0 : index
    %c0_13 = arith.constant 0 : index
    %24 = vector.load %arg2[%c0_12, %c0_13] : memref<1x16xi32, #tpu.memory_space<vmem>>, vector<1x16xi32>
    %25 = vector.broadcast %24 : vector<1x16xi32> to vector<8x16xi32>
    %26 = arith.cmpi eq, %25, %23 : vector<8x16xi32>
    %27 = arith.extui %26 : vector<8x16xi1> to vector<8x16xi32>
    %28 = arith.sitofp %27 : vector<8x16xi32> to vector<8x16xf32>
    %c0_14 = arith.constant 0 : index
    %c0_15 = arith.constant 0 : index
    %29 = vector.load %arg14[%c0_14, %c0_15] : memref<8x128xf32, #tpu.memory_space<vmem>>, vector<8x128xf32>
    %cst_16 = arith.constant dense<0.000000e+00> : vector<8x128xf32>
    %30 = tpu.matmul %28, %19, %cst_16 {dimension_numbers = #tpu.dot_dimension_numbers<[1], [0], [0], [1], [0, 0, 1, 1], [], []>} : vector<8x16xf32>, vector<16x128xf32>, vector<8x128xf32> -> vector<8x128xf32>
    %31 = arith.addf %29, %30 : vector<8x128xf32>
    %c0_17 = arith.constant 0 : index
    %c0_18 = arith.constant 0 : index
    %32 = vector.load %arg14[%c0_17, %c0_18] : memref<8x128xf32, #tpu.memory_space<vmem>>, vector<8x128xf32>
    tpu.vector_store %arg14[%c0_17, %c0_18], %31 {strides = array<i32>} : memref<8x128xf32, #tpu.memory_space<vmem>>, vector<8x128xf32>,
    %c0_19 = arith.constant 0 : index
    %c0_20 = arith.constant 0 : index
    %33 = vector.load %arg15[%c0_19, %c0_20] : memref<8x1xf32, #tpu.memory_space<vmem>>, vector<8x1xf32>
    %34 = arith.extui %26 : vector<8x16xi1> to vector<8x16xi32>
    %35 = arith.sitofp %34 : vector<8x16xi32> to vector<8x16xf32>
    %cst_21 = arith.constant dense<0.000000e+00> : vector<8xf32>
    %36 = vector.multi_reduction <add>, %35, %cst_21 [1] : vector<8x16xf32> to vector<8xf32>
    %37 = vector.shape_cast %36 : vector<8xf32> to vector<8x1xf32>
    %38 = arith.addf %33, %37 : vector<8x1xf32>
    %c0_22 = arith.constant 0 : index
    %c0_23 = arith.constant 0 : index
    %39 = vector.load %arg15[%c0_22, %c0_23] : memref<8x1xf32, #tpu.memory_space<vmem>>, vector<8x1xf32>
    tpu.vector_store %arg15[%c0_22, %c0_23], %38 {strides = array<i32>} : memref<8x1xf32, #tpu.memory_space<vmem>>, vector<8x1xf32>,
    %c0_i32_24 = arith.constant 0 : i32
    %40 = arith.cmpi eq, %arg1, %c0_i32_24 : i32
    %41 = arith.extui %40 : i1 to i32
    %c0_i32_25 = arith.constant 0 : i32
    %42 = arith.cmpi ne, %41, %c0_i32_25 : i32
    scf.if %42 {
      %c0_26 = arith.constant 0 : index
      %c0_27 = arith.constant 0 : index
      %43 = vector.load %arg15[%c0_26, %c0_27] : memref<8x1xf32, #tpu.memory_space<vmem>>, vector<8x1xf32>
      %cst_28 = arith.constant 1.000000e+00 : f32
      %44 = vector.broadcast %cst_28 : f32 to vector<8x1xf32>
      %45 = arith.maximumf %43, %44 : vector<8x1xf32>
      %46 = tpu.reciprocal %45 : vector<8x1xf32> -> vector<8x1xf32>
      %c0_29 = arith.constant 0 : index
      %c0_30 = arith.constant 0 : index
      %47 = vector.load %arg14[%c0_29, %c0_30] : memref<8x128xf32, #tpu.memory_space<vmem>>, vector<8x128xf32>
      %c0_31 = arith.constant 0 : index
      %c0_32 = arith.constant 0 : index
      %48 = vector.load %arg9[%c0_31, %c0_32] : memref<128x128xf32, #tpu.memory_space<vmem>>, vector<128x128xf32>
      %cst_33 = arith.constant dense<0.000000e+00> : vector<8x128xf32>
      %49 = tpu.matmul %47, %48, %cst_33 {dimension_numbers = #tpu.dot_dimension_numbers<[1], [0], [0], [1], [0, 0, 1, 1], [], []>} : vector<8x128xf32>, vector<128x128xf32>, vector<8x128xf32> -> vector<8x128xf32>
      %c0_34 = arith.constant 0 : index
      %c0_35 = arith.constant 0 : index
      %50 = vector.load %arg10[%c0_34, %c0_35] : memref<128x128xf32, #tpu.memory_space<vmem>>, vector<128x128xf32>
      %cst_36 = arith.constant dense<0.000000e+00> : vector<8x128xf32>
      %51 = tpu.matmul %47, %50, %cst_36 {dimension_numbers = #tpu.dot_dimension_numbers<[1], [0], [0], [1], [0, 0, 1, 1], [], []>} : vector<8x128xf32>, vector<128x128xf32>, vector<8x128xf32> -> vector<8x128xf32>
      %52 = vector.broadcast %46 : vector<8x1xf32> to vector<8x128xf32>
      %53 = arith.mulf %51, %52 : vector<8x128xf32>
      %54 = arith.addf %49, %53 : vector<8x128xf32>
      %c0_37 = arith.constant 0 : index
      %c0_38 = arith.constant 0 : index
      %55 = vector.load %arg4[%c0_37, %c0_38] : memref<8x128xf32, #tpu.memory_space<vmem>>, vector<8x128xf32>
      %c0_39 = arith.constant 0 : index
      %c0_40 = arith.constant 0 : index
      %56 = vector.load %arg11[%c0_39, %c0_40] : memref<128x128xf32, #tpu.memory_space<vmem>>, vector<128x128xf32>
      %cst_41 = arith.constant dense<0.000000e+00> : vector<8x128xf32>
      %57 = tpu.matmul %55, %56, %cst_41 {dimension_numbers = #tpu.dot_dimension_numbers<[1], [0], [0], [1], [0, 0, 1, 1], [], []>} : vector<8x128xf32>, vector<128x128xf32>, vector<8x128xf32> -> vector<8x128xf32>
      %58 = arith.addf %54, %57 : vector<8x128xf32>
      %c0_42 = arith.constant 0 : index
      %c0_43 = arith.constant 0 : index
      %59 = vector.load %arg12[%c0_42, %c0_43] : memref<1x128xf32, #tpu.memory_space<vmem>>, vector<1x128xf32>
      %60 = vector.broadcast %59 : vector<1x128xf32> to vector<8x128xf32>
      %61 = arith.addf %58, %60 : vector<8x128xf32>
      %c0_44 = arith.constant 0 : index
      %c0_45 = arith.constant 0 : index
      %62 = vector.load %arg13[%c0_44, %c0_45] : memref<8x128xf32, #tpu.memory_space<vmem>>, vector<8x128xf32>
      tpu.vector_store %arg13[%c0_44, %c0_45], %61 {strides = array<i32>} : memref<8x128xf32, #tpu.memory_space<vmem>>, vector<8x128xf32>,
    } else {
    }
    return
  }
  func.func @transform_0(%arg0: i32, %arg1: i32) -> (i32, i32) {
    %c0_i32 = arith.constant 0 : i32
    %c0_i32_0 = arith.constant 0 : i32
    return %c0_i32, %arg1 : i32, i32
  }
  func.func @transform_1(%arg0: i32, %arg1: i32) -> (i32, i32) {
    %c0_i32 = arith.constant 0 : i32
    %c0_i32_0 = arith.constant 0 : i32
    return %arg1, %c0_i32 : i32, i32
  }
  func.func @transform_2(%arg0: i32, %arg1: i32) -> (i32, i32) {
    %c0_i32 = arith.constant 0 : i32
    %c0_i32_0 = arith.constant 0 : i32
    return %arg0, %c0_i32 : i32, i32
  }
  func.func @transform_3(%arg0: i32, %arg1: i32) -> (i32, i32) {
    %c0_i32 = arith.constant 0 : i32
    %c0_i32_0 = arith.constant 0 : i32
    %c0_i32_1 = arith.constant 0 : i32
    return %c0_i32, %c0_i32_0 : i32, i32
  }
  func.func @transform_4(%arg0: i32, %arg1: i32) -> (i32, i32) {
    %c0_i32 = arith.constant 0 : i32
    %c0_i32_0 = arith.constant 0 : i32
    %c0_i32_1 = arith.constant 0 : i32
    return %c0_i32, %c0_i32_0 : i32, i32
  }
  func.func @transform_5(%arg0: i32, %arg1: i32) -> (i32, i32) {
    %c0_i32 = arith.constant 0 : i32
    %c0_i32_0 = arith.constant 0 : i32
    %c0_i32_1 = arith.constant 0 : i32
    return %c0_i32, %c0_i32_0 : i32, i32
  }
  func.func @transform_6(%arg0: i32, %arg1: i32) -> (i32, i32) {
    %c0_i32 = arith.constant 0 : i32
    %c0_i32_0 = arith.constant 0 : i32
    %c0_i32_1 = arith.constant 0 : i32
    return %c0_i32, %c0_i32_0 : i32, i32
  }
  func.func @transform_7(%arg0: i32, %arg1: i32) -> (i32, i32) {
    %c0_i32 = arith.constant 0 : i32
    %c0_i32_0 = arith.constant 0 : i32
    %c0_i32_1 = arith.constant 0 : i32
    return %c0_i32, %c0_i32_0 : i32, i32
  }
  func.func @transform_8(%arg0: i32, %arg1: i32) -> (i32, i32) {
    %c0_i32 = arith.constant 0 : i32
    %c0_i32_0 = arith.constant 0 : i32
    %c0_i32_1 = arith.constant 0 : i32
    return %c0_i32, %c0_i32_0 : i32, i32
  }
  func.func @transform_9(%arg0: i32, %arg1: i32) -> (i32, i32) {
    %c0_i32 = arith.constant 0 : i32
    %c0_i32_0 = arith.constant 0 : i32
    %c0_i32_1 = arith.constant 0 : i32
    return %c0_i32, %c0_i32_0 : i32, i32
  }
  func.func @transform_10(%arg0: i32, %arg1: i32) -> (i32, i32) {
    %c0_i32 = arith.constant 0 : i32
    %c0_i32_0 = arith.constant 0 : i32
    %c0_i32_1 = arith.constant 0 : i32
    return %c0_i32, %c0_i32_0 : i32, i32
  }
  func.func @transform_11(%arg0: i32, %arg1: i32) -> (i32, i32) {
    %c0_i32 = arith.constant 0 : i32
    %c0_i32_0 = arith.constant 0 : i32
    return %arg0, %c0_i32 : i32, i32
  }
}

</mosaic_0001>

<llo_original>
// kernel: tpu_custom_call.1
$region0: #{tpu_custom_call.1}
  #allocation0 [shape = 'u32[]', space=smem, size = 0x4, offset = 0x4, fixed_abs, tag = 'smem constant byte address 0x4 - core index']
  #allocation1 [shape = 'u32[144,128]{1,0:T(1,128)}', space=vmem, size = 0x12000, scoped, tag = 'internal scratch']
  #allocation2 [shape = 'f32[8,128]{1,0:T(8,128)}', space=vmem, size = 0x1000, scoped, tag = 'scratch operand']
  #allocation3 [shape = 'f32[8,1]{1,0:T(8,128)}', space=vmem, size = 0x1000, scoped, tag = 'scratch operand']
  %s0 = inlined_call_operand.hbm [shape: s32[1,16], index: 0, kind: input, shape index: {}]
  %s1 = inlined_call_operand.hbm [shape: f32[16,128], index: 1, kind: input, shape index: {}]
  %s2 = inlined_call_operand.hbm [shape: f32[8,128], index: 2, kind: input, shape index: {}]
  %s3 = inlined_call_operand.hbm [shape: f32[128,128], index: 3, kind: input, shape index: {}]
  %s4 = inlined_call_operand.vmem [shape: f32[1,128], index: 4, kind: input, shape index: {}]
  %s5 = inlined_call_operand.hbm [shape: f32[128,128], index: 5, kind: input, shape index: {}]
  %s6 = inlined_call_operand.vmem [shape: f32[1,128], index: 6, kind: input, shape index: {}]
  %s7 = inlined_call_operand.hbm [shape: f32[128,128], index: 7, kind: input, shape index: {}]
  %s8 = inlined_call_operand.hbm [shape: f32[128,128], index: 8, kind: input, shape index: {}]
  %s9 = inlined_call_operand.hbm [shape: f32[128,128], index: 9, kind: input, shape index: {}]
  %s10 = inlined_call_operand.vmem [shape: f32[1,128], index: 10, kind: input, shape index: {}]
  %s11 = inlined_call_operand.hbm [shape: f32[8,128], index: 11, kind: output, shape index: {}]
  %s12 = sld [smem:[#allocation0]]
  $region94: #{tpu_custom_call.1} parent=0
    _
  %s14 = ssub.s32 1, %s12
  %s15 = scalar_select 0, %s14, %s12
  $region1: #{tpu_custom_call.1} parent=0
    #allocation4 [shape = 'u8[512]{0}', space=vmem, size = 0x400, scoped, tag = 'input window, operand 0, single buffered']
    #allocation5 [shape = 's32[1]{0}', space=sflag, size = 0x4, scoped, tag = 'scoped memory for tpu_custom_call.1']
    #allocation6 [shape = 's32[1]{0}', space=sflag, size = 0x4, scoped, tag = 'scoped memory for tpu_custom_call.1']
    #allocation7 [shape = 'u8[8192]{0}', space=vmem, size = 0x2000, scoped, tag = 'input window, operand 1, single buffered']
    #allocation8 [shape = 's32[1]{0}', space=sflag, size = 0x4, scoped, tag = 'scoped memory for tpu_custom_call.1']
    #allocation9 [shape = 'u8[4096]{0}', space=vmem, size = 0x1000, scoped, tag = 'input window, operand 2, single buffered']
    #allocation10 [shape = 'u8[65536]{0}', space=vmem, size = 0x10000, scoped, tag = 'input window, operand 3, single buffered']
    #allocation11 [shape = 's32[1]{0}', space=sflag, size = 0x4, scoped, tag = 'scoped memory for tpu_custom_call.1']
    #allocation12 [shape = 'u8[65536]{0}', space=vmem, size = 0x10000, scoped, tag = 'input window, operand 5, single buffered']
    #allocation13 [shape = 'u8[65536]{0}', space=vmem, size = 0x10000, scoped, tag = 'input window, operand 7, single buffered']
    #allocation14 [shape = 's32[1]{0}', space=sflag, size = 0x4, scoped, tag = 'scoped memory for tpu_custom_call.1']
    #allocation15 [shape = 'u8[65536]{0}', space=vmem, size = 0x10000, scoped, tag = 'input window, operand 8, single buffered']
    #allocation16 [shape = 'u8[65536]{0}', space=vmem, size = 0x10000, scoped, tag = 'input window, operand 9, single buffered']
    #allocation17 [shape = 's32[1]{0}', space=sflag, size = 0x4, scoped, tag = 'scoped memory for tpu_custom_call.1']
    #allocation18 [shape = 'u8[4096]{0}', space=vmem, size = 0x1000, scoped, tag = 'output window, operand 0, single buffered']
    %16 = vsyncpa [#allocation5], 0
    %17 = vsyncpa [#allocation8], 0
    %18 = vsyncpa [#allocation11], 0
    %19 = vsyncpa [#allocation14], 0
    %20 = vsyncpa [#allocation17], 0
    %21 = vsyncpa [#allocation6], 0
    // Predicated region
    $region2: #{tpu_custom_call.1} parent=1 // pred_check
      _
    $region3: #{tpu_custom_call.1} parent=1 // pred_check_branch
      %23 = sbr.rel (0) target = $region5
    $region4: #{tpu_custom_call.1} parent=1 // pred_region
      %s25 = ssub.s32 16, 16
      %26 = vsyncadd [#allocation5], %s25
      %s28 = sshll.u32 [#allocation4], 4
      %s29 = int_to_ptr.vmem [resolvable:$true] %s28
      %31 = dma.hbm_to_vmem [thread:$0]  %s0, 16, %s29, [#allocation5]
    $region5: #{tpu_custom_call.1} parent=1 // pred_fallthru
      _
    // Predicated region
    $region6: #{tpu_custom_call.1} parent=1 // pred_check
      _
    $region7: #{tpu_custom_call.1} parent=1 // pred_check_branch
      %33 = sbr.rel (0) target = $region9
    $region8: #{tpu_custom_call.1} parent=1 // pred_region
      %s35 = ssub.s32 256, 256
      %36 = vsyncadd [#allocation8], %s35
      %s37 = sshll.u32 [#allocation7], 4
      %s38 = int_to_ptr.vmem [resolvable:$true] %s37
      %43 = dma.hbm_to_vmem [thread:$0]  %s1, 256, %s38, [#allocation8], 128, 128, 8
    $region9: #{tpu_custom_call.1} parent=1 // pred_fallthru
      _
    // Predicated region
    $region10: #{tpu_custom_call.1} parent=1 // pred_check
      _
    $region11: #{tpu_custom_call.1} parent=1 // pred_check_branch
      %45 = sbr.rel (0) target = $region13
    $region12: #{tpu_custom_call.1} parent=1 // pred_region
      %s47 = ssub.s32 128, 128
      %48 = vsyncadd [#allocation8], %s47
      %s50 = sshll.u32 [#allocation9], 4
      %s51 = int_to_ptr.vmem [resolvable:$true] %s50
      %53 = dma.hbm_to_vmem [thread:$0]  %s2, 128, %s51, [#allocation8]
    $region13: #{tpu_custom_call.1} parent=1 // pred_fallthru
      _
    // Predicated region
    $region14: #{tpu_custom_call.1} parent=1 // pred_check
      _
    $region15: #{tpu_custom_call.1} parent=1 // pred_check_branch
      %55 = sbr.rel (0) target = $region17
    $region16: #{tpu_custom_call.1} parent=1 // pred_region
      %s57 = ssub.s32 2048, 2048
      %58 = vsyncadd [#allocation11], %s57
      %s59 = sshll.u32 [#allocation10], 4
      %s60 = int_to_ptr.vmem [resolvable:$true] %s59
      %65 = dma.hbm_to_vmem [thread:$0]  %s3, 2048, %s60, [#allocation11], 128, 128, 8
    $region17: #{tpu_custom_call.1} parent=1 // pred_fallthru
      _
    // Predicated region
    $region18: #{tpu_custom_call.1} parent=1 // pred_check
      _
    $region19: #{tpu_custom_call.1} parent=1 // pred_check_branch
      %67 = sbr.rel (0) target = $region21
    $region20: #{tpu_custom_call.1} parent=1 // pred_region
      _
    $region21: #{tpu_custom_call.1} parent=1 // pred_fallthru
      _
    // Predicated region
    $region22: #{tpu_custom_call.1} parent=1 // pred_check
      _
    $region23: #{tpu_custom_call.1} parent=1 // pred_check_branch
      %69 = sbr.rel (0) target = $region25
    $region24: #{tpu_custom_call.1} parent=1 // pred_region
      %s71 = ssub.s32 2048, 2048
      %72 = vsyncadd [#allocation11], %s71
      %s73 = sshll.u32 [#allocation12], 4
      %s74 = int_to_ptr.vmem [resolvable:$true] %s73
      %79 = dma.hbm_to_vmem [thread:$0]  %s5, 2048, %s74, [#allocation11], 128, 128, 8
    $region25: #{tpu_custom_call.1} parent=1 // pred_fallthru
      _
    // Predicated region
    $region26: #{tpu_custom_call.1} parent=1 // pred_check
      _
    $region27: #{tpu_custom_call.1} parent=1 // pred_check_branch
      %81 = sbr.rel (0) target = $region29
    $region28: #{tpu_custom_call.1} parent=1 // pred_region
      _
    $region29: #{tpu_custom_call.1} parent=1 // pred_fallthru
      _
    // Predicated region
    $region30: #{tpu_custom_call.1} parent=1 // pred_check
      _
    $region31: #{tpu_custom_call.1} parent=1 // pred_check_branch
      %83 = sbr.rel (0) target = $region33
    $region32: #{tpu_custom_call.1} parent=1 // pred_region
      %s85 = ssub.s32 2048, 2048
      %86 = vsyncadd [#allocation14], %s85
      %s87 = sshll.u32 [#allocation13], 4
      %s88 = int_to_ptr.vmem [resolvable:$true] %s87
      %93 = dma.hbm_to_vmem [thread:$0]  %s7, 2048, %s88, [#allocation14], 128, 128, 8
    $region33: #{tpu_custom_call.1} parent=1 // pred_fallthru
      _
    // Predicated region
    $region34: #{tpu_custom_call.1} parent=1 // pred_check
      _
    $region35: #{tpu_custom_call.1} parent=1 // pred_check_branch
      %95 = sbr.rel (0) target = $region37
    $region36: #{tpu_custom_call.1} parent=1 // pred_region
      %s97 = ssub.s32 2048, 2048
      %98 = vsyncadd [#allocation14], %s97
      %s99 = sshll.u32 [#allocation15], 4
      %s100 = int_to_ptr.vmem [resolvable:$true] %s99
      %105 = dma.hbm_to_vmem [thread:$0]  %s8, 2048, %s100, [#allocation14], 128, 128, 8
    $region37: #{tpu_custom_call.1} parent=1 // pred_fallthru
      _
    // Predicated region
    $region38: #{tpu_custom_call.1} parent=1 // pred_check
      _
    $region39: #{tpu_custom_call.1} parent=1 // pred_check_branch
      %107 = sbr.rel (0) target = $region41
    $region40: #{tpu_custom_call.1} parent=1 // pred_region
      %s109 = ssub.s32 2048, 2048
      %110 = vsyncadd [#allocation17], %s109
      %s111 = sshll.u32 [#allocation16], 4
      %s112 = int_to_ptr.vmem [resolvable:$true] %s111
      %117 = dma.hbm_to_vmem [thread:$0]  %s9, 2048, %s112, [#allocation17], 128, 128, 8
    $region41: #{tpu_custom_call.1} parent=1 // pred_fallthru
      _
    // Predicated region
    $region42: #{tpu_custom_call.1} parent=1 // pred_check
      _
    $region43: #{tpu_custom_call.1} parent=1 // pred_check_branch
      %119 = sbr.rel (0) target = $region45
    $region44: #{tpu_custom_call.1} parent=1 // pred_region
      _
    $region45: #{tpu_custom_call.1} parent=1 // pred_fallthru
      _
    // Predicated region
    $region46: #{tpu_custom_call.1} parent=1 // pred_check
      _
    $region47: #{tpu_custom_call.1} parent=1 // pred_check_branch
      %121 = sbr.rel (0) target = $region49
    $region48: #{tpu_custom_call.1} parent=1 // pred_region
      %122 = dma.done [#allocation5], 16
    $region49: #{tpu_custom_call.1} parent=1 // pred_fallthru
      _
    // Predicated region
    $region50: #{tpu_custom_call.1} parent=1 // pred_check
      _
    $region51: #{tpu_custom_call.1} parent=1 // pred_check_branch
      %124 = sbr.rel (0) target = $region53
    $region52: #{tpu_custom_call.1} parent=1 // pred_region
      %125 = dma.done [#allocation8], 256
    $region53: #{tpu_custom_call.1} parent=1 // pred_fallthru
      _
    // Predicated region
    $region54: #{tpu_custom_call.1} parent=1 // pred_check
      _
    $region55: #{tpu_custom_call.1} parent=1 // pred_check_branch
      %127 = sbr.rel (0) target = $region57
    $region56: #{tpu_custom_call.1} parent=1 // pred_region
      %128 = dma.done [#allocation8], 128
    $region57: #{tpu_custom_call.1} parent=1 // pred_fallthru
      _
    // Predicated region
    $region58: #{tpu_custom_call.1} parent=1 // pred_check
      _
    $region59: #{tpu_custom_call.1} parent=1 // pred_check_branch
      %130 = sbr.rel (0) target = $region61
    $region60: #{tpu_custom_call.1} parent=1 // pred_region
      %131 = dma.done [#allocation11], 2048
    $region61: #{tpu_custom_call.1} parent=1 // pred_fallthru
      _
    // Predicated region
    $region62: #{tpu_custom_call.1} parent=1 // pred_check
      _
    $region63: #{tpu_custom_call.1} parent=1 // pred_check_branch
      %133 = sbr.rel (0) target = $region65
    $region64: #{tpu_custom_call.1} parent=1 // pred_region
      %134 = dma.done [#allocation11], 2048
    $region65: #{tpu_custom_call.1} parent=1 // pred_fallthru
      _
    // Predicated region
    $region66: #{tpu_custom_call.1} parent=1 // pred_check
      _
    $region67: #{tpu_custom_call.1} parent=1 // pred_check_branch
      %136 = sbr.rel (0) target = $region69
    $region68: #{tpu_custom_call.1} parent=1 // pred_region
      %137 = dma.done [#allocation14], 2048
    $region69: #{tpu_custom_call.1} parent=1 // pred_fallthru
      _
    // Predicated region
    $region70: #{tpu_custom_call.1} parent=1 // pred_check
      _
    $region71: #{tpu_custom_call.1} parent=1 // pred_check_branch
      %139 = sbr.rel (0) target = $region73
    $region72: #{tpu_custom_call.1} parent=1 // pred_region
      %140 = dma.done [#allocation14], 2048
    $region73: #{tpu_custom_call.1} parent=1 // pred_fallthru
      _
    // Predicated region
    $region74: #{tpu_custom_call.1} parent=1 // pred_check
      _
    $region75: #{tpu_custom_call.1} parent=1 // pred_check_branch
      %142 = sbr.rel (0) target = $region77
    $region76: #{tpu_custom_call.1} parent=1 // pred_region
      %143 = dma.done [#allocation17], 2048
    $region77: #{tpu_custom_call.1} parent=1 // pred_fallthru
      _
    %p144 = scmp.eq.s32.totalorder 0, 0
    // Predicated region
    $region78: #{tpu_custom_call.1} parent=1 // pred_check
      %p145 = pneg %p144
    $region79: #{tpu_custom_call.1} parent=1 // pred_check_branch
      %147 = sbr.rel (%p145) target = $region81
    $region80: #{tpu_custom_call.1} parent=1 // pred_region
      %148 = vst [vmem:[#allocation2] sm:$0xff] 0.0
      %vm149 = vcmask 7168
      %150 = vst.msk [vmem:[#allocation3] sm:$0xff] %vm149, 0.0
    $region81: #{tpu_custom_call.1} parent=1 // pred_fallthru
      _
    %v151 = vld [vmem:[#allocation7] sm:$0xff]
    %v152 = vld [vmem:[#allocation7 + $0x8] sm:$0xff]
    %v153 = vld [vmem:[#allocation10] sm:$0xff]
    %v154 = vld [vmem:[#allocation10 + $0x8] sm:$0xff]
    %v155 = vld [vmem:[#allocation10 + $0x10] sm:$0xff]
    %v156 = vld [vmem:[#allocation10 + $0x18] sm:$0xff]
    %v157 = vld [vmem:[#allocation10 + $0x20] sm:$0xff]
    %v158 = vld [vmem:[#allocation10 + $0x28] sm:$0xff]
    %v159 = vld [vmem:[#allocation10 + $0x30] sm:$0xff]
    %v160 = vld [vmem:[#allocation10 + $0x38] sm:$0xff]
    %v161 = vld [vmem:[#allocation10 + $0x40] sm:$0xff]
    %v162 = vld [vmem:[#allocation10 + $0x48] sm:$0xff]
    %v163 = vld [vmem:[#allocation10 + $0x50] sm:$0xff]
    %v164 = vld [vmem:[#allocation10 + $0x58] sm:$0xff]
    %v165 = vld [vmem:[#allocation10 + $0x60] sm:$0xff]
    %v166 = vld [vmem:[#allocation10 + $0x68] sm:$0xff]
    %v167 = vld [vmem:[#allocation10 + $0x70] sm:$0xff]
    %v168 = vld [vmem:[#allocation10 + $0x78] sm:$0xff]
    %v169 = vld [vmem:[%s4] sm:$0x1]
    %v171 = vlaneseq
    %v172 = vshrl.u32 %v171, 7
    %v173 = vsub.s32 0, %v172
    %v174 = vrot.slane %v169, %v173
    %176 = vmatprep.subr.mxu0 0.0
    %177 = vmatpush1.msra.mxu0 %v153
    %178 = vmatprep.subr.mxu0 0.0
    %179 = vmatpush1.msra.mxu0 %v154
    %180 = vmatprep.subr.mxu0 0.0
    %181 = vmatpush1.msra.mxu0 %v155
    %182 = vmatprep.subr.mxu0 0.0
    %183 = vmatpush1.msra.mxu0 %v156
    %184 = vmatprep.subr.mxu0 0.0
    %185 = vmatpush1.msra.mxu0 %v157
    %186 = vmatprep.subr.mxu0 0.0
    %187 = vmatpush1.msra.mxu0 %v158
    %188 = vmatprep.subr.mxu0 0.0
    %189 = vmatpush1.msra.mxu0 %v159
    %190 = vmatprep.subr.mxu0 0.0
    %191 = vmatpush1.msra.mxu0 %v160
    %192 = vmatprep.subr.mxu0 0.0
    %193 = vmatpush1.msra.mxu0 %v161
    %194 = vmatprep.subr.mxu0 0.0
    %195 = vmatpush1.msra.mxu0 %v162
    %196 = vmatprep.subr.mxu0 0.0
    %197 = vmatpush1.msra.mxu0 %v163
    %198 = vmatprep.subr.mxu0 0.0
    %199 = vmatpush1.msra.mxu0 %v164
    %200 = vmatprep.subr.mxu0 0.0
    %201 = vmatpush1.msra.mxu0 %v165
    %202 = vmatprep.subr.mxu0 0.0
    %203 = vmatpush1.msra.mxu0 %v166
    %204 = vmatprep.subr.mxu0 0.0
    %205 = vmatpush1.msra.mxu0 %v167
    %206 = vmatprep.subr.mxu0 0.0
    %207 = vmatpush1.msra.mxu0 %v168
    %208 = vmatprep.subr.mxu0 0.0
    %209 = vmatpush1.msra.mxu0 0.0
    %210 = vmatprep.subr.mxu0 0.0
    %211 = vmatpush1.msra.mxu0 0.0
    %212 = vmatprep.subr.mxu0 0.0
    %213 = vmatpush1.msra.mxu0 0.0
    %214 = vmatprep.subr.mxu0 0.0
    %215 = vmatpush1.msra.mxu0 0.0
    %216 = vmatprep.subr.mxu0 0.0
    %217 = vmatpush1.msra.mxu0 0.0
    %218 = vmatprep.subr.mxu0 0.0
    %219 = vmatpush1.msra.mxu0 0.0
    %220 = vmatprep.subr.mxu0 0.0
    %221 = vmatpush1.msra.mxu0 0.0
    %222 = vmatprep.subr.mxu0 0.0
    %223 = vmatpush1.msra.mxu0 0.0
    %224 = vmatprep.subr.mxu0 0.0
    %225 = vmatpush1.msra.mxu0 0.0
    %226 = vmatprep.subr.mxu0 0.0
    %227 = vmatpush1.msra.mxu0 0.0
    %228 = vmatprep.subr.mxu0 0.0
    %229 = vmatpush1.msra.mxu0 0.0
    %230 = vmatprep.subr.mxu0 0.0
    %231 = vmatpush1.msra.mxu0 0.0
    %232 = vmatprep.subr.mxu0 0.0
    %233 = vmatpush1.msra.mxu0 0.0
    %234 = vmatprep.subr.mxu0 0.0
    %235 = vmatpush1.msra.mxu0 0.0
    %236 = vmatprep.subr.mxu0 0.0
    %237 = vmatpush1.msra.mxu0 0.0
    %238 = vmatprep.subr.mxu0 0.0
    %239 = vmatpush1.msra.mxu0 0.0
    %240 = vmatprep.mubr.f32.mxu0 0.0
    %241 = vmatmul.mubr.f32.gmra.mrb[0].mxu0 %v151
    %v242 = vpop.f32.mrb[0].mxu0
    %v243 = vadd.f32 %v174, %v242
    %v244 = vpop.f32.mrb[0].mxu0
    %245 = vmatprep.mubr.f32.mxu0 0.0
    %246 = vmatmul.mubr.f32.gmra.mrb[0].mxu0 %v152
    %v247 = vpop.f32.mrb[0].mxu0
    %v248 = vadd.f32 %v174, %v247
    %v249 = vpop.f32.mrb[0].mxu0
    %250 = vdwg.mxu0
    %v251 = vld [vmem:[#allocation12] sm:$0xff]
    %v252 = vld [vmem:[#allocation12 + $0x8] sm:$0xff]
    %v253 = vld [vmem:[#allocation12 + $0x10] sm:$0xff]
    %v254 = vld [vmem:[#allocation12 + $0x18] sm:$0xff]
    %v255 = vld [vmem:[#allocation12 + $0x20] sm:$0xff]
    %v256 = vld [vmem:[#allocation12 + $0x28] sm:$0xff]
    %v257 = vld [vmem:[#allocation12 + $0x30] sm:$0xff]
    %v258 = vld [vmem:[#allocation12 + $0x38] sm:$0xff]
    %v259 = vld [vmem:[#allocation12 + $0x40] sm:$0xff]
    %v260 = vld [vmem:[#allocation12 + $0x48] sm:$0xff]
    %v261 = vld [vmem:[#allocation12 + $0x50] sm:$0xff]
    %v262 = vld [vmem:[#allocation12 + $0x58] sm:$0xff]
    %v263 = vld [vmem:[#allocation12 + $0x60] sm:$0xff]
    %v264 = vld [vmem:[#allocation12 + $0x68] sm:$0xff]
    %v265 = vld [vmem:[#allocation12 + $0x70] sm:$0xff]
    %v266 = vld [vmem:[#allocation12 + $0x78] sm:$0xff]
    %v267 = vld [vmem:[%s6] sm:$0x1]
    %v269 = vlaneseq
    %v270 = vshrl.u32 %v269, 7
    %v271 = vsub.s32 0, %v270
    %v272 = vrot.slane %v267, %v271
    %274 = vmatprep.subr.mxu0 0.0
    %275 = vmatpush1.msra.mxu0 %v251
    %276 = vmatprep.subr.mxu0 0.0
    %277 = vmatpush1.msra.mxu0 %v252
    %278 = vmatprep.subr.mxu0 0.0
    %279 = vmatpush1.msra.mxu0 %v253
    %280 = vmatprep.subr.mxu0 0.0
    %281 = vmatpush1.msra.mxu0 %v254
    %282 = vmatprep.subr.mxu0 0.0
    %283 = vmatpush1.msra.mxu0 %v255
    %284 = vmatprep.subr.mxu0 0.0
    %285 = vmatpush1.msra.mxu0 %v256
    %286 = vmatprep.subr.mxu0 0.0
    %287 = vmatpush1.msra.mxu0 %v257
    %288 = vmatprep.subr.mxu0 0.0
    %289 = vmatpush1.msra.mxu0 %v258
    %290 = vmatprep.subr.mxu0 0.0
    %291 = vmatpush1.msra.mxu0 %v259
    %292 = vmatprep.subr.mxu0 0.0
    %293 = vmatpush1.msra.mxu0 %v260
    %294 = vmatprep.subr.mxu0 0.0
    %295 = vmatpush1.msra.mxu0 %v261
    %296 = vmatprep.subr.mxu0 0.0
    %297 = vmatpush1.msra.mxu0 %v262
    %298 = vmatprep.subr.mxu0 0.0
    %299 = vmatpush1.msra.mxu0 %v263
    %300 = vmatprep.subr.mxu0 0.0
    %301 = vmatpush1.msra.mxu0 %v264
    %302 = vmatprep.subr.mxu0 0.0
    %303 = vmatpush1.msra.mxu0 %v265
    %304 = vmatprep.subr.mxu0 0.0
    %305 = vmatpush1.msra.mxu0 %v266
    %306 = vmatprep.subr.mxu0 0.0
    %307 = vmatpush1.msra.mxu0 0.0
    %308 = vmatprep.subr.mxu0 0.0
    %309 = vmatpush1.msra.mxu0 0.0
    %310 = vmatprep.subr.mxu0 0.0
    %311 = vmatpush1.msra.mxu0 0.0
    %312 = vmatprep.subr.mxu0 0.0
    %313 = vmatpush1.msra.mxu0 0.0
    %314 = vmatprep.subr.mxu0 0.0
    %315 = vmatpush1.msra.mxu0 0.0
    %316 = vmatprep.subr.mxu0 0.0
    %317 = vmatpush1.msra.mxu0 0.0
    %318 = vmatprep.subr.mxu0 0.0
    %319 = vmatpush1.msra.mxu0 0.0
    %320 = vmatprep.subr.mxu0 0.0
    %321 = vmatpush1.msra.mxu0 0.0
    %322 = vmatprep.subr.mxu0 0.0
    %323 = vmatpush1.msra.mxu0 0.0
    %324 = vmatprep.subr.mxu0 0.0
    %325 = vmatpush1.msra.mxu0 0.0
    %326 = vmatprep.subr.mxu0 0.0
    %327 = vmatpush1.msra.mxu0 0.0
    %328 = vmatprep.subr.mxu0 0.0
    %329 = vmatpush1.msra.mxu0 0.0
    %330 = vmatprep.subr.mxu0 0.0
    %331 = vmatpush1.msra.mxu0 0.0
    %332 = vmatprep.subr.mxu0 0.0
    %333 = vmatpush1.msra.mxu0 0.0
    %334 = vmatprep.subr.mxu0 0.0
    %335 = vmatpush1.msra.mxu0 0.0
    %336 = vmatprep.subr.mxu0 0.0
    %337 = vmatpush1.msra.mxu0 0.0
    %338 = vmatprep.mubr.f32.mxu0 0.0
    %339 = vmatmul.mubr.f32.gmra.mrb[0].mxu0 %v151
    %v340 = vpop.f32.mrb[0].mxu0
    %v341 = vadd.f32 %v272, %v340
    %v342 = vpop.f32.mrb[0].mxu0
    %343 = vmatprep.mubr.f32.mxu0 0.0
    %344 = vmatmul.mubr.f32.gmra.mrb[0].mxu0 %v152
    %v345 = vpop.f32.mrb[0].mxu0
    %v346 = vadd.f32 %v272, %v345
    %v347 = vpop.f32.mrb[0].mxu0
    %348 = vdwg.mxu0
    %v349 = vxor.u32 %v341, 2147483648
    %v350 = vxor.u32 %v346, 2147483648
    %v351 = vmul.f32 %v349, 1.442695
    %v352 = vpow.pop %v351
    %v353 = vmul.f32 %v350, 1.442695
    %v354 = vpow.pop %v353
    %v355 = vadd.f32 %v352, 1.0
    %v356 = vadd.f32 %v354, 1.0
    %v357 = vrcp.pop %v355
    %v358 = vmul.f32 1.0, %v357
    %v359 = vrcp.pop %v356
    %v360 = vmul.f32 1.0, %v359
    %v361 = vmul.f32 %v243, %v358
    %v362 = vmul.f32 %v248, %v360
    %s363 = smul.u32 0, 8
    %v364 = vlaneseq
    %v365 = vshrl.u32 %v364, 7
    %v366 = vstv %s363
    %v367 = vadd.s32 %v365, %v366
    %v368 = vld [vmem:[#allocation4] sm:$0x1]
    %v369 = vlaneseq
    %v370 = vshrl.u32 %v369, 7
    %v371 = vsub.s32 0, %v370
    %v372 = vrot.slane %v368, %v371
    %vm373 = vcmp.eq.s32.totalorder %v372, %v367
    %v374 = vsel %vm373, 1, 0
    %v375 = vcvt.s32.f32 %v374
    %v376 = vld [vmem:[#allocation2] sm:$0xff]
    %vm377 = vcmask 130048
    %v379 = vsel %vm377, %v375, 0
    %381 = vmatprep.subr.mxu0 0.0
    %382 = vmatpush1.msra.mxu0 %v361
    %383 = vmatprep.subr.mxu0 0.0
    %384 = vmatpush1.msra.mxu0 %v362
    %385 = vmatprep.subr.mxu0 0.0
    %386 = vmatpush1.msra.mxu0 0.0
    %387 = vmatprep.subr.mxu0 0.0
    %388 = vmatpush1.msra.mxu0 0.0
    %389 = vmatprep.subr.mxu0 0.0
    %390 = vmatpush1.msra.mxu0 0.0
    %391 = vmatprep.subr.mxu0 0.0
    %392 = vmatpush1.msra.mxu0 0.0
    %393 = vmatprep.subr.mxu0 0.0
    %394 = vmatpush1.msra.mxu0 0.0
    %395 = vmatprep.subr.mxu0 0.0
    %396 = vmatpush1.msra.mxu0 0.0
    %397 = vmatprep.subr.mxu0 0.0
    %398 = vmatpush1.msra.mxu0 0.0
    %399 = vmatprep.subr.mxu0 0.0
    %400 = vmatpush1.msra.mxu0 0.0
    %401 = vmatprep.subr.mxu0 0.0
    %402 = vmatpush1.msra.mxu0 0.0
    %403 = vmatprep.subr.mxu0 0.0
    %404 = vmatpush1.msra.mxu0 0.0
    %405 = vmatprep.subr.mxu0 0.0
    %406 = vmatpush1.msra.mxu0 0.0
    %407 = vmatprep.subr.mxu0 0.0
    %408 = vmatpush1.msra.mxu0 0.0
    %409 = vmatprep.subr.mxu0 0.0
    %410 = vmatpush1.msra.mxu0 0.0
    %411 = vmatprep.subr.mxu0 0.0
    %412 = vmatpush1.msra.mxu0 0.0
    %413 = vmatprep.subr.mxu0 0.0
    %414 = vmatpush1.msra.mxu0 0.0
    %415 = vmatprep.subr.mxu0 0.0
    %416 = vmatpush1.msra.mxu0 0.0
    %417 = vmatprep.subr.mxu0 0.0
    %418 = vmatpush1.msra.mxu0 0.0
    %419 = vmatprep.subr.mxu0 0.0
    %420 = vmatpush1.msra.mxu0 0.0
    %421 = vmatprep.subr.mxu0 0.0
    %422 = vmatpush1.msra.mxu0 0.0
    %423 = vmatprep.subr.mxu0 0.0
    %424 = vmatpush1.msra.mxu0 0.0
    %425 = vmatprep.subr.mxu0 0.0
    %426 = vmatpush1.msra.mxu0 0.0
    %427 = vmatprep.subr.mxu0 0.0
    %428 = vmatpush1.msra.mxu0 0.0
    %429 = vmatprep.subr.mxu0 0.0
    %430 = vmatpush1.msra.mxu0 0.0
    %431 = vmatprep.subr.mxu0 0.0
    %432 = vmatpush1.msra.mxu0 0.0
    %433 = vmatprep.subr.mxu0 0.0
    %434 = vmatpush1.msra.mxu0 0.0
    %435 = vmatprep.subr.mxu0 0.0
    %436 = vmatpush1.msra.mxu0 0.0
    %437 = vmatprep.subr.mxu0 0.0
    %438 = vmatpush1.msra.mxu0 0.0
    %439 = vmatprep.subr.mxu0 0.0
    %440 = vmatpush1.msra.mxu0 0.0
    %441 = vmatprep.subr.mxu0 0.0
    %442 = vmatpush1.msra.mxu0 0.0
    %443 = vmatprep.subr.mxu0 0.0
    %444 = vmatpush1.msra.mxu0 0.0
    %445 = vmatprep.mubr.f32.mxu0 0.0
    %446 = vmatmul.mubr.f32.gmra.mrb[0].mxu0 %v379
    %v447 = vpop.f32.mrb[0].mxu0
    %v448 = vadd.f32 0.0, %v447
    %v449 = vpop.f32.mrb[0].mxu0
    %450 = vdwg.mxu0
    %v451 = vadd.f32 %v376, %v448
    %452 = vst [vmem:[#allocation2] sm:$0xff] %v451
    %v453 = vld [vmem:[#allocation3] sm:$0xff]
    %v454 = vsel %vm377, %v375, 0.0
    %455 = vadd.xlane.f32.xlu0 %v454
    %v456 = vpop.xlane.xlu0 %455
    %v457 = vadd.f32 %v453, %v456
    %vm458 = vcmask 7168
    %459 = vst.msk [vmem:[#allocation3] sm:$0xff] %vm458, %v457
    // Predicated region
    $region82: #{tpu_custom_call.1} parent=1 // pred_check
      %p460 = pneg %p144
    $region83: #{tpu_custom_call.1} parent=1 // pred_check_branch
      %462 = sbr.rel (%p460) target = $region85
    $region84: #{tpu_custom_call.1} parent=1 // pred_region
      %v463 = vld [vmem:[#allocation3] sm:$0xff]
      %v464 = vmax.f32 %v463, 1.0
      %v465 = vrcp.pop %v464
      %v466 = vld [vmem:[#allocation2] sm:$0xff]
      %v467 = vld [vmem:[#allocation13] sm:$0xff]
      %v468 = vld [vmem:[#allocation13 + $0x8] sm:$0xff]
      %v469 = vld [vmem:[#allocation13 + $0x10] sm:$0xff]
      %v470 = vld [vmem:[#allocation13 + $0x18] sm:$0xff]
      %v471 = vld [vmem:[#allocation13 + $0x20] sm:$0xff]
      %v472 = vld [vmem:[#allocation13 + $0x28] sm:$0xff]
      %v473 = vld [vmem:[#allocation13 + $0x30] sm:$0xff]
      %v474 = vld [vmem:[#allocation13 + $0x38] sm:$0xff]
      %v475 = vld [vmem:[#allocation13 + $0x40] sm:$0xff]
      %v476 = vld [vmem:[#allocation13 + $0x48] sm:$0xff]
      %v477 = vld [vmem:[#allocation13 + $0x50] sm:$0xff]
      %v478 = vld [vmem:[#allocation13 + $0x58] sm:$0xff]
      %v479 = vld [vmem:[#allocation13 + $0x60] sm:$0xff]
      %v480 = vld [vmem:[#allocation13 + $0x68] sm:$0xff]
      %v481 = vld [vmem:[#allocation13 + $0x70] sm:$0xff]
      %v482 = vld [vmem:[#allocation13 + $0x78] sm:$0xff]
      %v483 = vld [vmem:[#allocation15] sm:$0xff]
      %v484 = vld [vmem:[#allocation15 + $0x8] sm:$0xff]
      %v485 = vld [vmem:[#allocation15 + $0x10] sm:$0xff]
      %v486 = vld [vmem:[#allocation15 + $0x18] sm:$0xff]
      %v487 = vld [vmem:[#allocation15 + $0x20] sm:$0xff]
      %v488 = vld [vmem:[#allocation15 + $0x28] sm:$0xff]
      %v489 = vld [vmem:[#allocation15 + $0x30] sm:$0xff]
      %v490 = vld [vmem:[#allocation15 + $0x38] sm:$0xff]
      %v491 = vld [vmem:[#allocation15 + $0x40] sm:$0xff]
      %v492 = vld [vmem:[#allocation15 + $0x48] sm:$0xff]
      %v493 = vld [vmem:[#allocation15 + $0x50] sm:$0xff]
      %v494 = vld [vmem:[#allocation15 + $0x58] sm:$0xff]
      %v495 = vld [vmem:[#allocation15 + $0x60] sm:$0xff]
      %v496 = vld [vmem:[#allocation15 + $0x68] sm:$0xff]
      %v497 = vld [vmem:[#allocation15 + $0x70] sm:$0xff]
      %v498 = vld [vmem:[#allocation15 + $0x78] sm:$0xff]
      %499 = vmatprep.subr.mxu0 0.0
      %500 = vmatpush1.msra.mxu0 %v483
      %501 = vmatprep.subr.mxu0 0.0
      %502 = vmatpush1.msra.mxu0 %v484
      %503 = vmatprep.subr.mxu0 0.0
      %504 = vmatpush1.msra.mxu0 %v485
      %505 = vmatprep.subr.mxu0 0.0
      %506 = vmatpush1.msra.mxu0 %v486
      %507 = vmatprep.subr.mxu0 0.0
      %508 = vmatpush1.msra.mxu0 %v487
      %509 = vmatprep.subr.mxu0 0.0
      %510 = vmatpush1.msra.mxu0 %v488
      %511 = vmatprep.subr.mxu0 0.0
      %512 = vmatpush1.msra.mxu0 %v489
      %513 = vmatprep.subr.mxu0 0.0
      %514 = vmatpush1.msra.mxu0 %v490
      %515 = vmatprep.subr.mxu0 0.0
      %516 = vmatpush1.msra.mxu0 %v491
      %517 = vmatprep.subr.mxu0 0.0
      %518 = vmatpush1.msra.mxu0 %v492
      %519 = vmatprep.subr.mxu0 0.0
      %520 = vmatpush1.msra.mxu0 %v493
      %521 = vmatprep.subr.mxu0 0.0
      %522 = vmatpush1.msra.mxu0 %v494
      %523 = vmatprep.subr.mxu0 0.0
      %524 = vmatpush1.msra.mxu0 %v495
      %525 = vmatprep.subr.mxu0 0.0
      %526 = vmatpush1.msra.mxu0 %v496
      %527 = vmatprep.subr.mxu0 0.0
      %528 = vmatpush1.msra.mxu0 %v497
      %529 = vmatprep.subr.mxu0 0.0
      %530 = vmatpush1.msra.mxu0 %v498
      %531 = vmatprep.subr.mxu0 0.0
      %532 = vmatpush1.msra.mxu0 0.0
      %533 = vmatprep.subr.mxu0 0.0
      %534 = vmatpush1.msra.mxu0 0.0
      %535 = vmatprep.subr.mxu0 0.0
      %536 = vmatpush1.msra.mxu0 0.0
      %537 = vmatprep.subr.mxu0 0.0
      %538 = vmatpush1.msra.mxu0 0.0
      %539 = vmatprep.subr.mxu0 0.0
      %540 = vmatpush1.msra.mxu0 0.0
      %541 = vmatprep.subr.mxu0 0.0
      %542 = vmatpush1.msra.mxu0 0.0
      %543 = vmatprep.subr.mxu0 0.0
      %544 = vmatpush1.msra.mxu0 0.0
      %545 = vmatprep.subr.mxu0 0.0
      %546 = vmatpush1.msra.mxu0 0.0
      %547 = vmatprep.subr.mxu0 0.0
      %548 = vmatpush1.msra.mxu0 0.0
      %549 = vmatprep.subr.mxu0 0.0
      %550 = vmatpush1.msra.mxu0 0.0
      %551 = vmatprep.subr.mxu0 0.0
      %552 = vmatpush1.msra.mxu0 0.0
      %553 = vmatprep.subr.mxu0 0.0
      %554 = vmatpush1.msra.mxu0 0.0
      %555 = vmatprep.subr.mxu0 0.0
      %556 = vmatpush1.msra.mxu0 0.0
      %557 = vmatprep.subr.mxu0 0.0
      %558 = vmatpush1.msra.mxu0 0.0
      %559 = vmatprep.subr.mxu0 0.0
      %560 = vmatpush1.msra.mxu0 0.0
      %561 = vmatprep.subr.mxu0 0.0
      %562 = vmatpush1.msra.mxu0 0.0
      %563 = vmatprep.mubr.f32.mxu0 0.0
      %564 = vmatmul.mubr.f32.gmra.mrb[0].mxu0 %v466
      %v565 = vpop.f32.mrb[0].mxu0
      %v566 = vadd.f32 0.0, %v565
      %v567 = vpop.f32.mrb[0].mxu0
      %568 = vdwg.mxu0
      %570 = vset.pattern.permute.xlu0 0
      %571 = vperm.xlu0 %570, %v465
      %v572 = vpop.permute.xlu0 %571
      %v574 = vmul.f32 %v566, %v572
      %575 = vmatprep.subr.mxu0 0.0
      %576 = vmatpush1.msra.mxu0 %v467
      %577 = vmatprep.subr.mxu0 0.0
      %578 = vmatpush1.msra.mxu0 %v468
      %579 = vmatprep.subr.mxu0 0.0
      %580 = vmatpush1.msra.mxu0 %v469
      %581 = vmatprep.subr.mxu0 0.0
      %582 = vmatpush1.msra.mxu0 %v470
      %583 = vmatprep.subr.mxu0 0.0
      %584 = vmatpush1.msra.mxu0 %v471
      %585 = vmatprep.subr.mxu0 0.0
      %586 = vmatpush1.msra.mxu0 %v472
      %587 = vmatprep.subr.mxu0 0.0
      %588 = vmatpush1.msra.mxu0 %v473
      %589 = vmatprep.subr.mxu0 0.0
      %590 = vmatpush1.msra.mxu0 %v474
      %591 = vmatprep.subr.mxu0 0.0
      %592 = vmatpush1.msra.mxu0 %v475
      %593 = vmatprep.subr.mxu0 0.0
      %594 = vmatpush1.msra.mxu0 %v476
      %595 = vmatprep.subr.mxu0 0.0
      %596 = vmatpush1.msra.mxu0 %v477
      %597 = vmatprep.subr.mxu0 0.0
      %598 = vmatpush1.msra.mxu0 %v478
      %599 = vmatprep.subr.mxu0 0.0
      %600 = vmatpush1.msra.mxu0 %v479
      %601 = vmatprep.subr.mxu0 0.0
      %602 = vmatpush1.msra.mxu0 %v480
      %603 = vmatprep.subr.mxu0 0.0
      %604 = vmatpush1.msra.mxu0 %v481
      %605 = vmatprep.subr.mxu0 0.0
      %606 = vmatpush1.msra.mxu0 %v482
      %607 = vmatprep.subr.mxu0 0.0
      %608 = vmatpush1.msra.mxu0 0.0
      %609 = vmatprep.subr.mxu0 0.0
      %610 = vmatpush1.msra.mxu0 0.0
      %611 = vmatprep.subr.mxu0 0.0
      %612 = vmatpush1.msra.mxu0 0.0
      %613 = vmatprep.subr.mxu0 0.0
      %614 = vmatpush1.msra.mxu0 0.0
      %615 = vmatprep.subr.mxu0 0.0
      %616 = vmatpush1.msra.mxu0 0.0
      %617 = vmatprep.subr.mxu0 0.0
      %618 = vmatpush1.msra.mxu0 0.0
      %619 = vmatprep.subr.mxu0 0.0
      %620 = vmatpush1.msra.mxu0 0.0
      %621 = vmatprep.subr.mxu0 0.0
      %622 = vmatpush1.msra.mxu0 0.0
      %623 = vmatprep.subr.mxu0 0.0
      %624 = vmatpush1.msra.mxu0 0.0
      %625 = vmatprep.subr.mxu0 0.0
      %626 = vmatpush1.msra.mxu0 0.0
      %627 = vmatprep.subr.mxu0 0.0
      %628 = vmatpush1.msra.mxu0 0.0
      %629 = vmatprep.subr.mxu0 0.0
      %630 = vmatpush1.msra.mxu0 0.0
      %631 = vmatprep.subr.mxu0 0.0
      %632 = vmatpush1.msra.mxu0 0.0
      %633 = vmatprep.subr.mxu0 0.0
      %634 = vmatpush1.msra.mxu0 0.0
      %635 = vmatprep.subr.mxu0 0.0
      %636 = vmatpush1.msra.mxu0 0.0
      %637 = vmatprep.subr.mxu0 0.0
      %638 = vmatpush1.msra.mxu0 0.0
      %639 = vmatprep.mubr.f32.mxu0 0.0
      %640 = vmatmul.mubr.f32.gmra.mrb[0].mxu0 %v466
      %v641 = vpop.f32.mrb[0].mxu0
      %v642 = vadd.f32 %v574, %v641
      %v643 = vpop.f32.mrb[0].mxu0
      %644 = vdwg.mxu0
      %v645 = vld [vmem:[#allocation9] sm:$0xff]
      %v646 = vld [vmem:[#allocation16] sm:$0xff]
      %v647 = vld [vmem:[#allocation16 + $0x8] sm:$0xff]
      %v648 = vld [vmem:[#allocation16 + $0x10] sm:$0xff]
      %v649 = vld [vmem:[#allocation16 + $0x18] sm:$0xff]
      %v650 = vld [vmem:[#allocation16 + $0x20] sm:$0xff]
      %v651 = vld [vmem:[#allocation16 + $0x28] sm:$0xff]
      %v652 = vld [vmem:[#allocation16 + $0x30] sm:$0xff]
      %v653 = vld [vmem:[#allocation16 + $0x38] sm:$0xff]
      %v654 = vld [vmem:[#allocation16 + $0x40] sm:$0xff]
      %v655 = vld [vmem:[#allocation16 + $0x48] sm:$0xff]
      %v656 = vld [vmem:[#allocation16 + $0x50] sm:$0xff]
      %v657 = vld [vmem:[#allocation16 + $0x58] sm:$0xff]
      %v658 = vld [vmem:[#allocation16 + $0x60] sm:$0xff]
      %v659 = vld [vmem:[#allocation16 + $0x68] sm:$0xff]
      %v660 = vld [vmem:[#allocation16 + $0x70] sm:$0xff]
      %v661 = vld [vmem:[#allocation16 + $0x78] sm:$0xff]
      %662 = vmatprep.subr.mxu0 0.0
      %663 = vmatpush1.msra.mxu0 %v646
      %664 = vmatprep.subr.mxu0 0.0
      %665 = vmatpush1.msra.mxu0 %v647
      %666 = vmatprep.subr.mxu0 0.0
      %667 = vmatpush1.msra.mxu0 %v648
      %668 = vmatprep.subr.mxu0 0.0
      %669 = vmatpush1.msra.mxu0 %v649
      %670 = vmatprep.subr.mxu0 0.0
      %671 = vmatpush1.msra.mxu0 %v650
      %672 = vmatprep.subr.mxu0 0.0
      %673 = vmatpush1.msra.mxu0 %v651
      %674 = vmatprep.subr.mxu0 0.0
      %675 = vmatpush1.msra.mxu0 %v652
      %676 = vmatprep.subr.mxu0 0.0
      %677 = vmatpush1.msra.mxu0 %v653
      %678 = vmatprep.subr.mxu0 0.0
      %679 = vmatpush1.msra.mxu0 %v654
      %680 = vmatprep.subr.mxu0 0.0
      %681 = vmatpush1.msra.mxu0 %v655
      %682 = vmatprep.subr.mxu0 0.0
      %683 = vmatpush1.msra.mxu0 %v656
      %684 = vmatprep.subr.mxu0 0.0
      %685 = vmatpush1.msra.mxu0 %v657
      %686 = vmatprep.subr.mxu0 0.0
      %687 = vmatpush1.msra.mxu0 %v658
      %688 = vmatprep.subr.mxu0 0.0
      %689 = vmatpush1.msra.mxu0 %v659
      %690 = vmatprep.subr.mxu0 0.0
      %691 = vmatpush1.msra.mxu0 %v660
      %692 = vmatprep.subr.mxu0 0.0
      %693 = vmatpush1.msra.mxu0 %v661
      %694 = vmatprep.subr.mxu0 0.0
      %695 = vmatpush1.msra.mxu0 0.0
      %696 = vmatprep.subr.mxu0 0.0
      %697 = vmatpush1.msra.mxu0 0.0
      %698 = vmatprep.subr.mxu0 0.0
      %699 = vmatpush1.msra.mxu0 0.0
      %700 = vmatprep.subr.mxu0 0.0
      %701 = vmatpush1.msra.mxu0 0.0
      %702 = vmatprep.subr.mxu0 0.0
      %703 = vmatpush1.msra.mxu0 0.0
      %704 = vmatprep.subr.mxu0 0.0
      %705 = vmatpush1.msra.mxu0 0.0
      %706 = vmatprep.subr.mxu0 0.0
      %707 = vmatpush1.msra.mxu0 0.0
      %708 = vmatprep.subr.mxu0 0.0
      %709 = vmatpush1.msra.mxu0 0.0
      %710 = vmatprep.subr.mxu0 0.0
      %711 = vmatpush1.msra.mxu0 0.0
      %712 = vmatprep.subr.mxu0 0.0
      %713 = vmatpush1.msra.mxu0 0.0
      %714 = vmatprep.subr.mxu0 0.0
      %715 = vmatpush1.msra.mxu0 0.0
      %716 = vmatprep.subr.mxu0 0.0
      %717 = vmatpush1.msra.mxu0 0.0
      %718 = vmatprep.subr.mxu0 0.0
      %719 = vmatpush1.msra.mxu0 0.0
      %720 = vmatprep.subr.mxu0 0.0
      %721 = vmatpush1.msra.mxu0 0.0
      %722 = vmatprep.subr.mxu0 0.0
      %723 = vmatpush1.msra.mxu0 0.0
      %724 = vmatprep.subr.mxu0 0.0
      %725 = vmatpush1.msra.mxu0 0.0
      %726 = vmatprep.mubr.f32.mxu0 0.0
      %727 = vmatmul.mubr.f32.gmra.mrb[0].mxu0 %v645
      %v728 = vpop.f32.mrb[0].mxu0
      %v729 = vadd.f32 0.0, %v728
      %v730 = vpop.f32.mrb[0].mxu0
      %731 = vdwg.mxu0
      %v732 = vadd.f32 %v642, %v729
      %v733 = vld [vmem:[%s10] sm:$0x1]
      %v735 = vlaneseq
      %v736 = vshrl.u32 %v735, 7
      %v737 = vsub.s32 0, %v736
      %v738 = vrot.slane %v733, %v737
      %v740 = vadd.f32 %v732, %v738
      %741 = vst [vmem:[#allocation18] sm:$0xff] %v740
    $region85: #{tpu_custom_call.1} parent=1 // pred_fallthru
      _
    // Predicated region
    $region86: #{tpu_custom_call.1} parent=1 // pred_check
      _
    $region87: #{tpu_custom_call.1} parent=1 // pred_check_branch
      %743 = sbr.rel (0) target = $region89
    $region88: #{tpu_custom_call.1} parent=1 // pred_region
      %s745 = ssub.s32 128, 128
      %746 = vsyncadd [#allocation6], %s745
      %s748 = sshll.u32 [#allocation18], 4
      %s749 = int_to_ptr.vmem [resolvable:$true] %s748
      %751 = dma.vmem_to_hbm [thread:$0]  %s749, 128, %s11, [#allocation6]
    $region89: #{tpu_custom_call.1} parent=1 // pred_fallthru
      _
    // Predicated region
    $region90: #{tpu_custom_call.1} parent=1 // pred_check
      _
    $region91: #{tpu_custom_call.1} parent=1 // pred_check_branch
      %753 = sbr.rel (0) target = $region93
    $region92: #{tpu_custom_call.1} parent=1 // pred_region
      %754 = dma.done [#allocation6], 128
    $region93: #{tpu_custom_call.1} parent=1 // pred_fallthru
      _
    %755 = vsyncpa [#allocation5], 1
    %756 = vsyncpa [#allocation8], 1
    %757 = vsyncpa [#allocation11], 1
    %758 = vsyncpa [#allocation14], 1
    %759 = vsyncpa [#allocation17], 1
    %760 = vsyncpa [#allocation6], 1

</llo_original>
